<compile_context>
chip_gen: v5e
topology: v5e:2x2
jax: 0.10.0
libtpu: 0.0.40
codegen_flags: <defaults>
</compile_context>

<pallas_src>
import functools

import jax
import jax.numpy as jnp
from jax.experimental import pallas as pl
from jax.experimental.pallas import tpu as pltpu


def _mlp_kernel(xT_ref, pk_ref, w2T_ref, o_ref):
    """Transposed-layout fused MLP.

    Shapes (per grid step):
      xT_ref : (1, block_b)       -- batch on lanes
      pk_ref : (hidden, 5)        -- packed [w1_col, b1, b2, w3_col, b3@row0] (resident)
      w2T_ref: (hidden, hidden)   -- W2^T (resident)
      o_ref  : (1, block_b)       -- lane-dense output slab
    """
    xT = xT_ref[...]                                            # (1, block_b)

    # Static lane slices of the single resident parameter block (hoisted once per step).
    w1c = pk_ref[:, 0:1]                                        # (hidden, 1)
    b1c = pk_ref[:, 1:2]                                        # (hidden, 1)
    b2c = pk_ref[:, 2:3]                                        # (hidden, 1)
    w3c = pk_ref[:, 3:4]                                        # (hidden, 1)
    b3 = pk_ref[0:1, 4:5]                                       # (1, 1)

    # Layer 1 (K = 1): broadcast outer product on the VPU + tanh on the EUP.
    h1T = jnp.tanh(w1c * xT + b1c)                              # (hidden, block_b)

    # Layer 2 (hidden x hidden): the only real matmul -> MXU, f32 accumulate.
    h2T = jnp.tanh(
        jnp.dot(w2T_ref[...], h1T, preferred_element_type=jnp.float32) + b2c
    )                                                           # (hidden, block_b)

    # Layer 3 (out_dim = 1): VPU multiply + XLU cross-sublane reduce; output stays lane-dense.
    outT = jnp.sum(w3c * h2T, axis=0, keepdims=True) + b3       # (1, block_b)

    o_ref[...] = outT.astype(o_ref.dtype)


def _choose_block_b(batch, target_block_b, min_steps):
    """Largest 128-multiple tile <= target_block_b that keeps >= min_steps grid steps
    when the batch allows it (keeps both v7x TensorCores busy and lets the software
    pipeline overlap DMA with compute).  Tiny batches get a single 128-multiple tile."""
    if batch <= 128 * min_steps:
        return min(target_block_b, max(128, pl.cdiv(batch, 128) * 128))
    cap = max(128, (batch // min_steps) // 128 * 128)
    return max(128, min(target_block_b, cap))


@functools.partial(jax.jit, static_argnames=("block_b", "min_steps"))
def mlp_forward(x, w1, b1, w2, b2, w3, b3, *, block_b=8192, min_steps=4):
    """MLP forward pass, tiled over batch with batch on the lane axis.

    x : (B, 1) float32.  Weights in (in, out) layout, biases (1, out).
    Returns (B, 1) float32.  `block_b` is a target tile size (sweepable); the
    effective tile is coupled to the batch so the grid keeps multiple steps.
    """
    B, in_dim = x.shape
    hidden_dim = w1.shape[1]
    out_dim = w3.shape[1]
    # Kernel is specialized to the module's default shapes (input_dim=1, output_dim=1).
    assert in_dim == 1 and out_dim == 1, "kernel specialized for input_dim=output_dim=1"

    bb = _choose_block_b(B, block_b, min_steps)
    assert bb % 128 == 0, "block size must be a multiple of 128 (lane width)"
    num_blocks = pl.cdiv(B, bb)
    B_pad = num_blocks * bb

    # Fast path: free (1, B) reshape (in_dim == 1).  Pad only for a ragged tail.
    xT = x.reshape(1, B)
    if B_pad != B:
        xT = jnp.pad(xT, ((0, 0), (0, B_pad - B)))              # fallback only

    # One resident (hidden, 5) parameter block: [w1 col, b1, b2, w3 col, b3@row0].
    b3_col = jnp.zeros((hidden_dim, 1), jnp.float32).at[0, 0].set(b3.reshape(()))
    packed = jnp.concatenate(
        [w1.T, b1.reshape(hidden_dim, 1), b2.reshape(hidden_dim, 1), w3, b3_col],
        axis=1,
    )                                                           # (hidden, 5)
    w2T = w2.T                                                  # (hidden, hidden)

    H = hidden_dim
    cost = pl.CostEstimate(
        flops=B_pad * (2 * H * H + 5 * H + 1),
        transcendentals=B_pad * 2 * H,
        bytes_accessed=4 * (B_pad * (in_dim + out_dim) + H * H + 5 * H),
    )

    outT = pl.pallas_call(
        _mlp_kernel,
        out_shape=jax.ShapeDtypeStruct((1, B_pad), jnp.float32),
        grid_spec=pltpu.PrefetchScalarGridSpec(
            num_scalar_prefetch=0,
            grid=(num_blocks,),
            in_specs=[
                # batch tile of the (transposed) input: lane-dense
                pl.BlockSpec((1, bb), lambda i: (0, i)),
                # packed small params + W2^T: full arrays, constant block index ->
                # fetched once, stay resident in VMEM across grid steps.
                pl.BlockSpec((hidden_dim, 5), lambda i: (0, 0)),
                pl.BlockSpec((hidden_dim, hidden_dim), lambda i: (0, 0)),
            ],
            # lane-dense output slab (1, block_b) -> unmasked vector stores
            out_specs=pl.BlockSpec((1, bb), lambda i: (0, i)),
        ),
        compiler_params=pltpu.CompilerParams(
            # batch axis is embarrassingly parallel -> megacore split on v7x
            dimension_semantics=("parallel",)
        ),
        cost_estimate=cost,
    )(xT, packed, w2T)

    out = outT if B_pad == B else outT[:, :B]
    return out.reshape(B, out_dim)


def init_params(key, input_dim=1, hidden_dim=64, output_dim=1):
    """Deterministic init mimicking PyTorch Linear default U(-1/sqrt(fan_in), +1/sqrt(fan_in))."""
    keys = jax.random.split(key, 6)

    def linear(kw, kb, fan_in, fan_out):
        bound = 1.0 / jnp.sqrt(jnp.float32(fan_in))
        w = jax.random.uniform(kw, (fan_in, fan_out), jnp.float32, -bound, bound)
        b = jax.random.uniform(kb, (1, fan_out), jnp.float32, -bound, bound)
        return w, b

    w1, b1 = linear(keys[0], keys[1], input_dim, hidden_dim)
    w2, b2 = linear(keys[2], keys[3], hidden_dim, hidden_dim)
    w3, b3 = linear(keys[4], keys[5], hidden_dim, output_dim)
    return w1, b1, w2, b2, w3, b3


def mlp_reference(x, w1, b1, w2, b2, w3, b3):
    h1 = jnp.tanh(x @ w1 + b1)
    h2 = jnp.tanh(h1 @ w2 + b2)
    return h2 @ w3 + b3


if __name__ == "__main__":
    key = jax.random.PRNGKey(0)
    k_params, k_x1, k_x2 = jax.random.split(key, 3)

    input_dim, hidden_dim, output_dim = 1, 64, 1
    params = init_params(k_params, input_dim, hidden_dim, output_dim)

    # Fast (no-pad) path: B = 2048 -> effective block_b = 512, 4 parallel grid steps
    # (both v7x TensorCores busy, DMA/compute overlap).  Larger batches scale the
    # tile up toward the 8192 target automatically.
    batch = 2048
    x = jax.random.normal(k_x1, (batch, input_dim), dtype=jnp.float32)
    out = jax.block_until_ready(mlp_forward(x, *params))
    ref = mlp_reference(x, *params)
    assert out.shape == (batch, output_dim), out.shape
    assert jnp.allclose(out, ref, atol=1e-5, rtol=1e-5), "mismatch vs reference (fast path)"

    # Small, non-multiple batch (typical Reptile task size) exercises the ragged-tail
    # padded fallback path.
    x_small = jax.random.normal(k_x2, (10, input_dim), dtype=jnp.float32)
    out_small = jax.block_until_ready(mlp_forward(x_small, *params))
    ref_small = mlp_reference(x_small, *params)
    assert out_small.shape == (10, output_dim), out_small.shape
    assert jnp.allclose(out_small, ref_small, atol=1e-5, rtol=1e-5), "mismatch vs reference (padded path)"

    print("KERNEL_OK")
</pallas_src>

<mosaic_0001>
module attributes {stable_mosaic.version = 11 : i64} {
  func.func @_mlp_kernel(%arg0: i32, %arg1: memref<1x512xf32, #tpu.memory_space<vmem>>, %arg2: memref<64x5xf32, #tpu.memory_space<vmem>>, %arg3: memref<64x64xf32, #tpu.memory_space<vmem>>, %arg4: memref<1x512xf32, #tpu.memory_space<vmem>>) attributes {dimension_semantics = [#tpu.dimension_semantics<parallel>], iteration_bounds = array<i64: 4>, scalar_prefetch = 0 : i64, scratch_operands = 0 : i64, tpu.core_type = #tpu.core_type<tc>, window_params = [{transform_indices = @transform_0, window_bounds = array<i64: 1, 512>}, {pipeline_mode = #tpu.pipeline_mode<synchronous>, transform_indices = @transform_1, window_bounds = array<i64: 64, 5>}, {pipeline_mode = #tpu.pipeline_mode<synchronous>, transform_indices = @transform_2, window_bounds = array<i64: 64, 64>}, {transform_indices = @transform_3, window_bounds = array<i64: 1, 512>}]} {
    %c0 = arith.constant 0 : index
    %c0_0 = arith.constant 0 : index
    %0 = vector.load %arg1[%c0, %c0_0] : memref<1x512xf32, #tpu.memory_space<vmem>>, vector<1x512xf32>
    %c0_1 = arith.constant 0 : index
    %c0_2 = arith.constant 0 : index
    %1 = vector.load %arg2[%c0_1, %c0_2] : memref<64x5xf32, #tpu.memory_space<vmem>>, vector<64x1xf32>
    %c0_3 = arith.constant 0 : index
    %c1 = arith.constant 1 : index
    %2 = vector.load %arg2[%c0_3, %c1] : memref<64x5xf32, #tpu.memory_space<vmem>>, vector<64x1xf32>
    %c0_4 = arith.constant 0 : index
    %c2 = arith.constant 2 : index
    %3 = vector.load %arg2[%c0_4, %c2] : memref<64x5xf32, #tpu.memory_space<vmem>>, vector<64x1xf32>
    %c0_5 = arith.constant 0 : index
    %c3 = arith.constant 3 : index
    %4 = vector.load %arg2[%c0_5, %c3] : memref<64x5xf32, #tpu.memory_space<vmem>>, vector<64x1xf32>
    %c0_6 = arith.constant 0 : index
    %c4 = arith.constant 4 : index
    %5 = vector.load %arg2[%c0_6, %c4] : memref<64x5xf32, #tpu.memory_space<vmem>>, vector<1x1xf32>
    %6 = vector.broadcast %1 : vector<64x1xf32> to vector<64x512xf32>
    %7 = vector.broadcast %0 : vector<1x512xf32> to vector<64x512xf32>
    %8 = arith.mulf %6, %7 : vector<64x512xf32>
    %9 = vector.broadcast %2 : vector<64x1xf32> to vector<64x512xf32>
    %10 = arith.addf %8, %9 : vector<64x512xf32>
    %11 = math.tanh %10 : vector<64x512xf32>
    %c0_7 = arith.constant 0 : index
    %c0_8 = arith.constant 0 : index
    %12 = vector.load %arg3[%c0_7, %c0_8] : memref<64x64xf32, #tpu.memory_space<vmem>>, vector<64x64xf32>
    %cst = arith.constant dense<0.000000e+00> : vector<64x512xf32>
    %13 = tpu.matmul %12, %11, %cst {dimension_numbers = #tpu.dot_dimension_numbers<[1], [0], [0], [1], [0, 0, 1, 1], [], []>} : vector<64x64xf32>, vector<64x512xf32>, vector<64x512xf32> -> vector<64x512xf32>
    %14 = vector.broadcast %3 : vector<64x1xf32> to vector<64x512xf32>
    %15 = arith.addf %13, %14 : vector<64x512xf32>
    %16 = math.tanh %15 : vector<64x512xf32>
    %17 = vector.broadcast %4 : vector<64x1xf32> to vector<64x512xf32>
    %18 = arith.mulf %17, %16 : vector<64x512xf32>
    %cst_9 = arith.constant dense<0.000000e+00> : vector<512xf32>
    %19 = vector.multi_reduction <add>, %18, %cst_9 [0] : vector<64x512xf32> to vector<512xf32>
    %20 = vector.shape_cast %19 : vector<512xf32> to vector<1x512xf32>
    %21 = vector.broadcast %5 : vector<1x1xf32> to vector<1x512xf32>
    %22 = arith.addf %20, %21 : vector<1x512xf32>
    %c0_10 = arith.constant 0 : index
    %c0_11 = arith.constant 0 : index
    %23 = vector.load %arg4[%c0_10, %c0_11] : memref<1x512xf32, #tpu.memory_space<vmem>>, vector<1x512xf32>
    tpu.vector_store %arg4[%c0_10, %c0_11], %22 {strides = array<i32>} : memref<1x512xf32, #tpu.memory_space<vmem>>, vector<1x512xf32>,
    return
  }
  func.func @transform_0(%arg0: i32) -> (i32, i32) {
    %c0_i32 = arith.constant 0 : i32
    %c0_i32_0 = arith.constant 0 : i32
    return %c0_i32, %arg0 : i32, i32
  }
  func.func @transform_1(%arg0: i32) -> (i32, i32) {
    %c0_i32 = arith.constant 0 : i32
    %c0_i32_0 = arith.constant 0 : i32
    %c0_i32_1 = arith.constant 0 : i32
    return %c0_i32, %c0_i32_0 : i32, i32
  }
  func.func @transform_2(%arg0: i32) -> (i32, i32) {
    %c0_i32 = arith.constant 0 : i32
    %c0_i32_0 = arith.constant 0 : i32
    %c0_i32_1 = arith.constant 0 : i32
    return %c0_i32, %c0_i32_0 : i32, i32
  }
  func.func @transform_3(%arg0: i32) -> (i32, i32) {
    %c0_i32 = arith.constant 0 : i32
    %c0_i32_0 = arith.constant 0 : i32
    return %c0_i32, %arg0 : i32, i32
  }
}

</mosaic_0001>

<llo_original>
// kernel: mlp_forward.1
$region0: #{mlp_forward.1}
  #allocation0 [shape = 'u32[]', space=smem, size = 0x4, offset = 0x4, fixed_abs, tag = 'smem constant byte address 0x4 - core index']
  #allocation1 [shape = 'u32[72,128]{1,0:T(1,128)}', space=vmem, size = 0x9000, scoped, tag = 'internal scratch']
  %s0 = inlined_call_operand.vmem [shape: f32[1,2048], index: 0, kind: input, shape index: {}]
  %s1 = inlined_call_operand.vmem [shape: f32[64,5], index: 1, kind: input, shape index: {}]
  %s2 = inlined_call_operand.vmem [shape: f32[64,64], index: 2, kind: input, shape index: {}]
  %s3 = inlined_call_operand.hbm [shape: f32[1,2048], index: 3, kind: output, shape index: {}]
  %s4 = sld [smem:[#allocation0]]
  $region45: #{mlp_forward.1} parent=0
    _
  %s6 = ssub.s32 1, %s4
  %s7 = scalar_select 0, %s6, %s4
  $region1: #{mlp_forward.1} parent=0
    #allocation2 [shape = 'u8[4096]{0}', space=vmem, size = 0x1000, scoped, tag = 'output window, operand 0']
    #allocation3 [shape = 's32[2]{0}', space=sflag, size = 0x8, scoped, tag = 'scoped memory for mlp_forward.1']
    %8 = vsyncpa [#allocation3], 0
    %s9 = scalar_lea.sflag [#allocation3], 1
    %10 = vsyncpa %s9, 0
    loop: start=0, step=1, limit=6
    $region2: #{mlp_forward.1} parent=1 // loop_pre_header
      _
    $region3: #{mlp_forward.1} parent=1 // loop_header
      %s12 = sphi 0, %s16
      %p13 = scmp.ge.s32.totalorder %s12, 6
      %s22 = sphi 0, %s24
      %s25 = sphi 0, %s22
      %s26 = sphi 0, %s25
      %s42 = sphi 0, %s26
      %s46 = sphi 0, %s46
      %s48 = sphi 0, %s46
      %s49 = sphi 0, %s48
      %s63 = sphi 0, %s49
      %s67 = sphi 0, %s67
      %s69 = sphi 0, %s67
      %s70 = sphi 0, %s69
      %s84 = sphi 0, %s70
      %s90 = sphi 0, %s92
      %s93 = sphi 0, %s90
      %s94 = sphi 0, %s93
      %s110 = sphi 0, %s94
    $region4: #{mlp_forward.1} parent=1 // loop_header_branch
      %15 = sbr.rel (%p13) target = $region8
    $region5: #{mlp_forward.1} parent=1 // loop_body
      %s17 = ssub.s32 %s12, 1
      %s18 = ssub.s32 %s12, 2
      %s19 = sadd.s32 %s12, 1
      %s20 = ssub.s32 %s12, %s19
      %p21 = scmp.eq.s32.totalorder %s20, 0
      %s23 = sadd.s32 %s22, 1
      %s24 = scalar_select %p21, %s22, %s23
      %p27 = pneg %p21
      %p28 = scmp.eq.s32.totalorder %s12, 3
      %p29 = por %p27, %p28
      %p30 = scmp.ne.s32.totalorder %s22, %s25
      %p31 = scmp.eq.s32.totalorder %s12, 0
      %p32 = por %p30, %p31
      %p33 = scmp.ne.s32.totalorder %s22, %s25
      %p34 = scmp.eq.s32.totalorder %s17, 3
      %p35 = por %p33, %p34
      %p36 = scmp.ne.s32.totalorder %s25, %s26
      %p37 = scmp.eq.s32.totalorder %s17, 0
      %p38 = por %p36, %p37
      %p39 = scmp.ne.s32.totalorder %s25, %s26
      %p40 = scmp.eq.s32.totalorder %s18, 3
      %p41 = por %p39, %p40
      %p43 = scmp.ne.s32.totalorder %s26, %s42
      %p44 = scmp.eq.s32.totalorder %s18, 0
      %p45 = por %p43, %p44
      %s47 = sadd.s32 %s46, 1
      %p50 = scmp.eq.s32.totalorder %s12, 3
      %p51 = scmp.ne.s32.totalorder %s46, %s48
      %p52 = scmp.eq.s32.totalorder %s12, 0
      %p53 = por %p51, %p52
      %p54 = scmp.ne.s32.totalorder %s46, %s48
      %p55 = scmp.eq.s32.totalorder %s17, 3
      %p56 = por %p54, %p55
      %p57 = scmp.ne.s32.totalorder %s48, %s49
      %p58 = scmp.eq.s32.totalorder %s17, 0
      %p59 = por %p57, %p58
      %p60 = scmp.ne.s32.totalorder %s48, %s49
      %p61 = scmp.eq.s32.totalorder %s18, 3
      %p62 = por %p60, %p61
      %p64 = scmp.ne.s32.totalorder %s49, %s63
      %p65 = scmp.eq.s32.totalorder %s18, 0
      %p66 = por %p64, %p65
      %s68 = sadd.s32 %s67, 1
      %p71 = scmp.eq.s32.totalorder %s12, 3
      %p72 = scmp.ne.s32.totalorder %s67, %s69
      %p73 = scmp.eq.s32.totalorder %s12, 0
      %p74 = por %p72, %p73
      %p75 = scmp.ne.s32.totalorder %s67, %s69
      %p76 = scmp.eq.s32.totalorder %s17, 3
      %p77 = por %p75, %p76
      %p78 = scmp.ne.s32.totalorder %s69, %s70
      %p79 = scmp.eq.s32.totalorder %s17, 0
      %p80 = por %p78, %p79
      %p81 = scmp.ne.s32.totalorder %s69, %s70
      %p82 = scmp.eq.s32.totalorder %s18, 3
      %p83 = por %p81, %p82
      %p85 = scmp.ne.s32.totalorder %s70, %s84
      %p86 = scmp.eq.s32.totalorder %s18, 0
      %p87 = por %p85, %p86
      %s88 = ssub.s32 %s12, %s19
      %p89 = scmp.eq.s32.totalorder %s88, 0
      %s91 = sadd.s32 %s90, 1
      %s92 = scalar_select %p89, %s90, %s91
      %p95 = pneg %p89
      %p96 = scmp.eq.s32.totalorder %s12, 3
      %p97 = por %p95, %p96
      %p98 = scmp.ne.s32.totalorder %s90, %s93
      %p99 = scmp.eq.s32.totalorder %s12, 0
      %p100 = por %p98, %p99
      %p101 = scmp.ne.s32.totalorder %s90, %s93
      %p102 = scmp.eq.s32.totalorder %s17, 3
      %p103 = por %p101, %p102
      %p104 = scmp.ne.s32.totalorder %s93, %s94
      %p105 = scmp.eq.s32.totalorder %s17, 0
      %p106 = por %p104, %p105
      %p107 = scmp.ne.s32.totalorder %s93, %s94
      %p108 = scmp.eq.s32.totalorder %s18, 3
      %p109 = por %p107, %p108
      %p111 = scmp.ne.s32.totalorder %s94, %s110
      %p112 = scmp.eq.s32.totalorder %s18, 0
      %p113 = por %p111, %p112
      %p114 = scmp.le.s32.totalorder 1, %s12
      %p115 = scmp.lt.s32.totalorder %s12, 5
      %p116 = pnand %p114, %p115
      %p117 = pneg %p116
      // Predicated region
      $region9: #{mlp_forward.1} parent=5 // pred_check
        _
      $region10: #{mlp_forward.1} parent=5 // pred_check_branch
        %119 = sbr.rel (%p116) target = $region12
      $region11: #{mlp_forward.1} parent=5 // pred_region
        %s120 = ssub.s32 %s12, 1
        // Predicated region
        $region13: #{mlp_forward.1} parent=11 // pred_check
          %p121 = pneg %p59
        $region14: #{mlp_forward.1} parent=11 // pred_check_branch
          %123 = sbr.rel (%p121) target = $region16
        $region15: #{mlp_forward.1} parent=11 // pred_region
          _
        $region16: #{mlp_forward.1} parent=11 // pred_fallthru
          _
        // Predicated region
        $region17: #{mlp_forward.1} parent=11 // pred_check
          %p124 = pneg %p80
        $region18: #{mlp_forward.1} parent=11 // pred_check_branch
          %126 = sbr.rel (%p124) target = $region20
        $region19: #{mlp_forward.1} parent=11 // pred_region
          _
        $region20: #{mlp_forward.1} parent=11 // pred_fallthru
          _
      $region12: #{mlp_forward.1} parent=5 // pred_fallthru
        _
      %p127 = scmp.lt.s32.totalorder %s12, 4
      // Predicated region
      $region21: #{mlp_forward.1} parent=5 // pred_check
        %p128 = pneg %p127
      $region22: #{mlp_forward.1} parent=5 // pred_check_branch
        %130 = sbr.rel (%p128) target = $region24
      $region23: #{mlp_forward.1} parent=5 // pred_region
        // Predicated region
        $region25: #{mlp_forward.1} parent=23 // pred_check
          %p131 = pneg %p32
        $region26: #{mlp_forward.1} parent=23 // pred_check_branch
          %133 = sbr.rel (%p131) target = $region28
        $region27: #{mlp_forward.1} parent=23 // pred_region
          %s134 = smul.u32 4, %s12
          %p135 = scmp.lt.s32.totalorder %s134, 15
          %s136 = scalar_select %p135, %s134, 15
          %s137 = scalar_lea.vmem %s0, %s136
          %s138 = smul.u32 4, %s12
        $region28: #{mlp_forward.1} parent=23 // pred_fallthru
          _
      $region24: #{mlp_forward.1} parent=5 // pred_fallthru
        _
      %p139 = scmp.le.s32.totalorder 1, %s12
      %p140 = scmp.lt.s32.totalorder %s12, 5
      %p141 = pnand %p139, %p140
      %p142 = pneg %p141
      // Predicated region
      $region29: #{mlp_forward.1} parent=5 // pred_check
        _
      $region30: #{mlp_forward.1} parent=5 // pred_check_branch
        %144 = sbr.rel (%p141) target = $region32
      $region31: #{mlp_forward.1} parent=5 // pred_region
        %s145 = ssub.s32 %s12, 1
        %s146 = smul.u32 4, %s17
        %p147 = scmp.lt.s32.totalorder %s146, 15
        %s148 = scalar_select %p147, %s146, 15
        %s149 = scalar_lea.vmem %s0, %s148
        %p150 = pneg %p38
        %p151 = pneg %p35
        %p152 = pneg %p59
        %p153 = pneg %p56
        %p154 = pneg %p80
        %p155 = pneg %p77
        %p156 = pneg %p106
        %p157 = pneg %p103
        %s158 = sand.u32 %s93, 1
        %s159 = scalar_lea.sflag [#allocation3], %s158
        %s160 = sand.u32 %s93, 1
        %s161 = smul.addr %s160, 4
        %s162 = scalar_lea.vmem [#allocation2], %s161
        %s163 = smul.u32 4, %s17
        %p164 = scmp.lt.s32.totalorder %s163, 15
        %s165 = scalar_select %p164, %s163, 15
        %s166 = scalar_lea.vmem %s0, %s165
        %s167 = smul.u32 4, %s17
        %s168 = smul.u32 4, %s17
        %v169 = vld [vmem:[%s166] sm:$0xf]
        %v170 = vld [vmem:[%s1] sm:$0xff]
        %v171 = vld [vmem:[%s1 + $0x8] sm:$0xff]
        %v172 = vld [vmem:[%s1 + $0x10] sm:$0xff]
        %v173 = vld [vmem:[%s1 + $0x18] sm:$0xff]
        %v174 = vld [vmem:[%s1 + $0x20] sm:$0xff]
        %v175 = vld [vmem:[%s1 + $0x28] sm:$0xff]
        %v176 = vld [vmem:[%s1 + $0x30] sm:$0xff]
        %v177 = vld [vmem:[%s1 + $0x38] sm:$0xff]
        %v178 = vld [vmem:[%s1] sm:$0x1]
        %180 = vset.pattern.permute.xlu0 0
        %181 = vperm.xlu0 %180, %v170
        %v182 = vpop.permute.xlu0 %181
        %185 = vset.pattern.permute.xlu0 0
        %186 = vperm.xlu0 %185, %v171
        %v187 = vpop.permute.xlu0 %186
        %190 = vset.pattern.permute.xlu0 0
        %191 = vperm.xlu0 %190, %v172
        %v192 = vpop.permute.xlu0 %191
        %195 = vset.pattern.permute.xlu0 0
        %196 = vperm.xlu0 %195, %v173
        %v197 = vpop.permute.xlu0 %196
        %200 = vset.pattern.permute.xlu0 0
        %201 = vperm.xlu0 %200, %v174
        %v202 = vpop.permute.xlu0 %201
        %205 = vset.pattern.permute.xlu0 0
        %206 = vperm.xlu0 %205, %v175
        %v207 = vpop.permute.xlu0 %206
        %210 = vset.pattern.permute.xlu0 0
        %211 = vperm.xlu0 %210, %v176
        %v212 = vpop.permute.xlu0 %211
        %215 = vset.pattern.permute.xlu0 0
        %216 = vperm.xlu0 %215, %v177
        %v217 = vpop.permute.xlu0 %216
        %v220 = vperm.slane %v169, 0
        %v221 = vperm.slane %v169, 1
        %v222 = vperm.slane %v169, 2
        %v223 = vperm.slane %v169, 3
        %v228 = vmul.f32 %v182, %v220
        %v229 = vmul.f32 %v182, %v221
        %v230 = vmul.f32 %v182, %v222
        %v231 = vmul.f32 %v182, %v223
        %v232 = vmul.f32 %v187, %v220
        %v233 = vmul.f32 %v187, %v221
        %v234 = vmul.f32 %v187, %v222
        %v235 = vmul.f32 %v187, %v223
        %v236 = vmul.f32 %v192, %v220
        %v237 = vmul.f32 %v192, %v221
        %v238 = vmul.f32 %v192, %v222
        %v239 = vmul.f32 %v192, %v223
        %v240 = vmul.f32 %v197, %v220
        %v241 = vmul.f32 %v197, %v221
        %v242 = vmul.f32 %v197, %v222
        %v243 = vmul.f32 %v197, %v223
        %v244 = vmul.f32 %v202, %v220
        %v245 = vmul.f32 %v202, %v221
        %v246 = vmul.f32 %v202, %v222
        %v247 = vmul.f32 %v202, %v223
        %v248 = vmul.f32 %v207, %v220
        %v249 = vmul.f32 %v207, %v221
        %v250 = vmul.f32 %v207, %v222
        %v251 = vmul.f32 %v207, %v223
        %v252 = vmul.f32 %v212, %v220
        %v253 = vmul.f32 %v212, %v221
        %v254 = vmul.f32 %v212, %v222
        %v255 = vmul.f32 %v212, %v223
        %v256 = vmul.f32 %v217, %v220
        %v257 = vmul.f32 %v217, %v221
        %v258 = vmul.f32 %v217, %v222
        %v259 = vmul.f32 %v217, %v223
        %260 = vset.pattern.permute.xlu0 1
        %261 = vperm.xlu0 %260, %v170
        %v262 = vpop.permute.xlu0 %261
        %264 = vset.pattern.permute.xlu0 1
        %265 = vperm.xlu0 %264, %v171
        %v266 = vpop.permute.xlu0 %265
        %268 = vset.pattern.permute.xlu0 1
        %269 = vperm.xlu0 %268, %v172
        %v270 = vpop.permute.xlu0 %269
        %272 = vset.pattern.permute.xlu0 1
        %273 = vperm.xlu0 %272, %v173
        %v274 = vpop.permute.xlu0 %273
        %276 = vset.pattern.permute.xlu0 1
        %277 = vperm.xlu0 %276, %v174
        %v278 = vpop.permute.xlu0 %277
        %280 = vset.pattern.permute.xlu0 1
        %281 = vperm.xlu0 %280, %v175
        %v282 = vpop.permute.xlu0 %281
        %284 = vset.pattern.permute.xlu0 1
        %285 = vperm.xlu0 %284, %v176
        %v286 = vpop.permute.xlu0 %285
        %288 = vset.pattern.permute.xlu0 1
        %289 = vperm.xlu0 %288, %v177
        %v290 = vpop.permute.xlu0 %289
        %v292 = vadd.f32 %v228, %v262
        %v293 = vadd.f32 %v229, %v262
        %v294 = vadd.f32 %v230, %v262
        %v295 = vadd.f32 %v231, %v262
        %v296 = vadd.f32 %v232, %v266
        %v297 = vadd.f32 %v233, %v266
        %v298 = vadd.f32 %v234, %v266
        %v299 = vadd.f32 %v235, %v266
        %v300 = vadd.f32 %v236, %v270
        %v301 = vadd.f32 %v237, %v270
        %v302 = vadd.f32 %v238, %v270
        %v303 = vadd.f32 %v239, %v270
        %v304 = vadd.f32 %v240, %v274
        %v305 = vadd.f32 %v241, %v274
        %v306 = vadd.f32 %v242, %v274
        %v307 = vadd.f32 %v243, %v274
        %v308 = vadd.f32 %v244, %v278
        %v309 = vadd.f32 %v245, %v278
        %v310 = vadd.f32 %v246, %v278
        %v311 = vadd.f32 %v247, %v278
        %v312 = vadd.f32 %v248, %v282
        %v313 = vadd.f32 %v249, %v282
        %v314 = vadd.f32 %v250, %v282
        %v315 = vadd.f32 %v251, %v282
        %v316 = vadd.f32 %v252, %v286
        %v317 = vadd.f32 %v253, %v286
        %v318 = vadd.f32 %v254, %v286
        %v319 = vadd.f32 %v255, %v286
        %v320 = vadd.f32 %v256, %v290
        %v321 = vadd.f32 %v257, %v290
        %v322 = vadd.f32 %v258, %v290
        %v323 = vadd.f32 %v259, %v290
        %v324 = vtanh.pop %v292
        %v325 = vtanh.pop %v293
        %v326 = vtanh.pop %v294
        %v327 = vtanh.pop %v295
        %v328 = vtanh.pop %v296
        %v329 = vtanh.pop %v297
        %v330 = vtanh.pop %v298
        %v331 = vtanh.pop %v299
        %v332 = vtanh.pop %v300
        %v333 = vtanh.pop %v301
        %v334 = vtanh.pop %v302
        %v335 = vtanh.pop %v303
        %v336 = vtanh.pop %v304
        %v337 = vtanh.pop %v305
        %v338 = vtanh.pop %v306
        %v339 = vtanh.pop %v307
        %v340 = vtanh.pop %v308
        %v341 = vtanh.pop %v309
        %v342 = vtanh.pop %v310
        %v343 = vtanh.pop %v311
        %v344 = vtanh.pop %v312
        %v345 = vtanh.pop %v313
        %v346 = vtanh.pop %v314
        %v347 = vtanh.pop %v315
        %v348 = vtanh.pop %v316
        %v349 = vtanh.pop %v317
        %v350 = vtanh.pop %v318
        %v351 = vtanh.pop %v319
        %v352 = vtanh.pop %v320
        %v353 = vtanh.pop %v321
        %v354 = vtanh.pop %v322
        %v355 = vtanh.pop %v323
        %v356 = vld [vmem:[%s2] sm:$0xff]
        %v357 = vld [vmem:[%s2 + $0x8] sm:$0xff]
        %v358 = vld [vmem:[%s2 + $0x10] sm:$0xff]
        %v359 = vld [vmem:[%s2 + $0x18] sm:$0xff]
        %v360 = vld [vmem:[%s2 + $0x20] sm:$0xff]
        %v361 = vld [vmem:[%s2 + $0x28] sm:$0xff]
        %v362 = vld [vmem:[%s2 + $0x30] sm:$0xff]
        %v363 = vld [vmem:[%s2 + $0x38] sm:$0xff]
        %364 = vset.pattern.permute.xlu0 2
        %365 = vperm.xlu0 %364, %v170
        %v366 = vpop.permute.xlu0 %365
        %368 = vset.pattern.permute.xlu0 2
        %369 = vperm.xlu0 %368, %v171
        %v370 = vpop.permute.xlu0 %369
        %372 = vset.pattern.permute.xlu0 2
        %373 = vperm.xlu0 %372, %v172
        %v374 = vpop.permute.xlu0 %373
        %376 = vset.pattern.permute.xlu0 2
        %377 = vperm.xlu0 %376, %v173
        %v378 = vpop.permute.xlu0 %377
        %380 = vset.pattern.permute.xlu0 2
        %381 = vperm.xlu0 %380, %v174
        %v382 = vpop.permute.xlu0 %381
        %384 = vset.pattern.permute.xlu0 2
        %385 = vperm.xlu0 %384, %v175
        %v386 = vpop.permute.xlu0 %385
        %388 = vset.pattern.permute.xlu0 2
        %389 = vperm.xlu0 %388, %v176
        %v390 = vpop.permute.xlu0 %389
        %392 = vset.pattern.permute.xlu0 2
        %393 = vperm.xlu0 %392, %v177
        %v394 = vpop.permute.xlu0 %393
        %vm396 = vcmask 523264
        %v398 = vsel %vm396, %v356, 0
        %v401 = vsel %vm396, %v357, 0
        %v404 = vsel %vm396, %v358, 0
        %v407 = vsel %vm396, %v359, 0
        %v410 = vsel %vm396, %v360, 0
        %v413 = vsel %vm396, %v361, 0
        %v416 = vsel %vm396, %v362, 0
        %v419 = vsel %vm396, %v363, 0
        %421 = vmatpush.msra.mxu0 0.0
        %422 = vmatpush.msra.mxu0 0.0
        %423 = vmatpush.msra.mxu0 0.0
        %424 = vmatpush.msra.mxu0 0.0
        %425 = vmatpush.msra.mxu0 0.0
        %426 = vmatpush.msra.mxu0 0.0
        %427 = vmatpush.msra.mxu0 0.0
        %428 = vmatpush.msra.mxu0 0.0
        %429 = vmatpush.msra.mxu0 %v352
        %430 = vmatpush.msra.mxu0 %v348
        %431 = vmatpush.msra.mxu0 %v344
        %432 = vmatpush.msra.mxu0 %v340
        %433 = vmatpush.msra.mxu0 %v336
        %434 = vmatpush.msra.mxu0 %v332
        %435 = vmatpush.msra.mxu0 %v328
        %436 = vmatpush.msra.mxu0 %v324
        %437 = vmatmul.f32.gmra.mxu0 %v398
        %v438 = vpop.f32.mrf.mxu0
        %v439 = vadd.f32 %v366, %v438
        %440 = vmatmul.f32.gmra.mxu0 %v401
        %v441 = vpop.f32.mrf.mxu0
        %v442 = vadd.f32 %v370, %v441
        %443 = vmatmul.f32.gmra.mxu0 %v404
        %v444 = vpop.f32.mrf.mxu0
        %v445 = vadd.f32 %v374, %v444
        %446 = vmatmul.f32.gmra.mxu0 %v407
        %v447 = vpop.f32.mrf.mxu0
        %v448 = vadd.f32 %v378, %v447
        %449 = vmatmul.f32.gmra.mxu0 %v410
        %v450 = vpop.f32.mrf.mxu0
        %v451 = vadd.f32 %v382, %v450
        %452 = vmatmul.f32.gmra.mxu0 %v413
        %v453 = vpop.f32.mrf.mxu0
        %v454 = vadd.f32 %v386, %v453
        %455 = vmatmul.f32.gmra.mxu0 %v416
        %v456 = vpop.f32.mrf.mxu0
        %v457 = vadd.f32 %v390, %v456
        %458 = vmatmul.f32.gmra.mxu0 %v419
        %v459 = vpop.f32.mrf.mxu0
        %v460 = vadd.f32 %v394, %v459
        %461 = vdwg.mxu0
        %462 = vmatpush.msra.mxu0 0.0
        %463 = vmatpush.msra.mxu0 0.0
        %464 = vmatpush.msra.mxu0 0.0
        %465 = vmatpush.msra.mxu0 0.0
        %466 = vmatpush.msra.mxu0 0.0
        %467 = vmatpush.msra.mxu0 0.0
        %468 = vmatpush.msra.mxu0 0.0
        %469 = vmatpush.msra.mxu0 0.0
        %470 = vmatpush.msra.mxu0 %v353
        %471 = vmatpush.msra.mxu0 %v349
        %472 = vmatpush.msra.mxu0 %v345
        %473 = vmatpush.msra.mxu0 %v341
        %474 = vmatpush.msra.mxu0 %v337
        %475 = vmatpush.msra.mxu0 %v333
        %476 = vmatpush.msra.mxu0 %v329
        %477 = vmatpush.msra.mxu0 %v325
        %478 = vmatmul.f32.gmra.mxu0 %v398
        %v479 = vpop.f32.mrf.mxu0
        %v480 = vadd.f32 %v366, %v479
        %481 = vmatmul.f32.gmra.mxu0 %v401
        %v482 = vpop.f32.mrf.mxu0
        %v483 = vadd.f32 %v370, %v482
        %484 = vmatmul.f32.gmra.mxu0 %v404
        %v485 = vpop.f32.mrf.mxu0
        %v486 = vadd.f32 %v374, %v485
        %487 = vmatmul.f32.gmra.mxu0 %v407
        %v488 = vpop.f32.mrf.mxu0
        %v489 = vadd.f32 %v378, %v488
        %490 = vmatmul.f32.gmra.mxu0 %v410
        %v491 = vpop.f32.mrf.mxu0
        %v492 = vadd.f32 %v382, %v491
        %493 = vmatmul.f32.gmra.mxu0 %v413
        %v494 = vpop.f32.mrf.mxu0
        %v495 = vadd.f32 %v386, %v494
        %496 = vmatmul.f32.gmra.mxu0 %v416
        %v497 = vpop.f32.mrf.mxu0
        %v498 = vadd.f32 %v390, %v497
        %499 = vmatmul.f32.gmra.mxu0 %v419
        %v500 = vpop.f32.mrf.mxu0
        %v501 = vadd.f32 %v394, %v500
        %502 = vdwg.mxu0
        %503 = vmatpush.msra.mxu0 0.0
        %504 = vmatpush.msra.mxu0 0.0
        %505 = vmatpush.msra.mxu0 0.0
        %506 = vmatpush.msra.mxu0 0.0
        %507 = vmatpush.msra.mxu0 0.0
        %508 = vmatpush.msra.mxu0 0.0
        %509 = vmatpush.msra.mxu0 0.0
        %510 = vmatpush.msra.mxu0 0.0
        %511 = vmatpush.msra.mxu0 %v354
        %512 = vmatpush.msra.mxu0 %v350
        %513 = vmatpush.msra.mxu0 %v346
        %514 = vmatpush.msra.mxu0 %v342
        %515 = vmatpush.msra.mxu0 %v338
        %516 = vmatpush.msra.mxu0 %v334
        %517 = vmatpush.msra.mxu0 %v330
        %518 = vmatpush.msra.mxu0 %v326
        %519 = vmatmul.f32.gmra.mxu0 %v398
        %v520 = vpop.f32.mrf.mxu0
        %v521 = vadd.f32 %v366, %v520
        %522 = vmatmul.f32.gmra.mxu0 %v401
        %v523 = vpop.f32.mrf.mxu0
        %v524 = vadd.f32 %v370, %v523
        %525 = vmatmul.f32.gmra.mxu0 %v404
        %v526 = vpop.f32.mrf.mxu0
        %v527 = vadd.f32 %v374, %v526
        %528 = vmatmul.f32.gmra.mxu0 %v407
        %v529 = vpop.f32.mrf.mxu0
        %v530 = vadd.f32 %v378, %v529
        %531 = vmatmul.f32.gmra.mxu0 %v410
        %v532 = vpop.f32.mrf.mxu0
        %v533 = vadd.f32 %v382, %v532
        %534 = vmatmul.f32.gmra.mxu0 %v413
        %v535 = vpop.f32.mrf.mxu0
        %v536 = vadd.f32 %v386, %v535
        %537 = vmatmul.f32.gmra.mxu0 %v416
        %v538 = vpop.f32.mrf.mxu0
        %v539 = vadd.f32 %v390, %v538
        %540 = vmatmul.f32.gmra.mxu0 %v419
        %v541 = vpop.f32.mrf.mxu0
        %v542 = vadd.f32 %v394, %v541
        %543 = vdwg.mxu0
        %544 = vmatpush.msra.mxu0 0.0
        %545 = vmatpush.msra.mxu0 0.0
        %546 = vmatpush.msra.mxu0 0.0
        %547 = vmatpush.msra.mxu0 0.0
        %548 = vmatpush.msra.mxu0 0.0
        %549 = vmatpush.msra.mxu0 0.0
        %550 = vmatpush.msra.mxu0 0.0
        %551 = vmatpush.msra.mxu0 0.0
        %552 = vmatpush.msra.mxu0 %v355
        %553 = vmatpush.msra.mxu0 %v351
        %554 = vmatpush.msra.mxu0 %v347
        %555 = vmatpush.msra.mxu0 %v343
        %556 = vmatpush.msra.mxu0 %v339
        %557 = vmatpush.msra.mxu0 %v335
        %558 = vmatpush.msra.mxu0 %v331
        %559 = vmatpush.msra.mxu0 %v327
        %560 = vmatmul.f32.gmra.mxu0 %v398
        %v561 = vpop.f32.mrf.mxu0
        %v562 = vadd.f32 %v366, %v561
        %563 = vmatmul.f32.gmra.mxu0 %v401
        %v564 = vpop.f32.mrf.mxu0
        %v565 = vadd.f32 %v370, %v564
        %566 = vmatmul.f32.gmra.mxu0 %v404
        %v567 = vpop.f32.mrf.mxu0
        %v568 = vadd.f32 %v374, %v567
        %569 = vmatmul.f32.gmra.mxu0 %v407
        %v570 = vpop.f32.mrf.mxu0
        %v571 = vadd.f32 %v378, %v570
        %572 = vmatmul.f32.gmra.mxu0 %v410
        %v573 = vpop.f32.mrf.mxu0
        %v574 = vadd.f32 %v382, %v573
        %575 = vmatmul.f32.gmra.mxu0 %v413
        %v576 = vpop.f32.mrf.mxu0
        %v577 = vadd.f32 %v386, %v576
        %578 = vmatmul.f32.gmra.mxu0 %v416
        %v579 = vpop.f32.mrf.mxu0
        %v580 = vadd.f32 %v390, %v579
        %581 = vmatmul.f32.gmra.mxu0 %v419
        %v582 = vpop.f32.mrf.mxu0
        %v583 = vadd.f32 %v394, %v582
        %584 = vdwg.mxu0
        %v585 = vtanh.pop %v439
        %v586 = vtanh.pop %v480
        %v587 = vtanh.pop %v521
        %v588 = vtanh.pop %v562
        %v589 = vtanh.pop %v442
        %v590 = vtanh.pop %v483
        %v591 = vtanh.pop %v524
        %v592 = vtanh.pop %v565
        %v593 = vtanh.pop %v445
        %v594 = vtanh.pop %v486
        %v595 = vtanh.pop %v527
        %v596 = vtanh.pop %v568
        %v597 = vtanh.pop %v448
        %v598 = vtanh.pop %v489
        %v599 = vtanh.pop %v530
        %v600 = vtanh.pop %v571
        %v601 = vtanh.pop %v451
        %v602 = vtanh.pop %v492
        %v603 = vtanh.pop %v533
        %v604 = vtanh.pop %v574
        %v605 = vtanh.pop %v454
        %v606 = vtanh.pop %v495
        %v607 = vtanh.pop %v536
        %v608 = vtanh.pop %v577
        %v609 = vtanh.pop %v457
        %v610 = vtanh.pop %v498
        %v611 = vtanh.pop %v539
        %v612 = vtanh.pop %v580
        %v613 = vtanh.pop %v460
        %v614 = vtanh.pop %v501
        %v615 = vtanh.pop %v542
        %v616 = vtanh.pop %v583
        %617 = vset.pattern.permute.xlu0 3
        %618 = vperm.xlu0 %617, %v170
        %v619 = vpop.permute.xlu0 %618
        %621 = vset.pattern.permute.xlu0 3
        %622 = vperm.xlu0 %621, %v171
        %v623 = vpop.permute.xlu0 %622
        %625 = vset.pattern.permute.xlu0 3
        %626 = vperm.xlu0 %625, %v172
        %v627 = vpop.permute.xlu0 %626
        %629 = vset.pattern.permute.xlu0 3
        %630 = vperm.xlu0 %629, %v173
        %v631 = vpop.permute.xlu0 %630
        %633 = vset.pattern.permute.xlu0 3
        %634 = vperm.xlu0 %633, %v174
        %v635 = vpop.permute.xlu0 %634
        %637 = vset.pattern.permute.xlu0 3
        %638 = vperm.xlu0 %637, %v175
        %v639 = vpop.permute.xlu0 %638
        %641 = vset.pattern.permute.xlu0 3
        %642 = vperm.xlu0 %641, %v176
        %v643 = vpop.permute.xlu0 %642
        %645 = vset.pattern.permute.xlu0 3
        %646 = vperm.xlu0 %645, %v177
        %v647 = vpop.permute.xlu0 %646
        %v649 = vmul.f32 %v619, %v585
        %v650 = vmul.f32 %v619, %v586
        %v651 = vmul.f32 %v619, %v587
        %v652 = vmul.f32 %v619, %v588
        %v653 = vmul.f32 %v623, %v589
        %v654 = vmul.f32 %v623, %v590
        %v655 = vmul.f32 %v623, %v591
        %v656 = vmul.f32 %v623, %v592
        %v657 = vmul.f32 %v627, %v593
        %v658 = vmul.f32 %v627, %v594
        %v659 = vmul.f32 %v627, %v595
        %v660 = vmul.f32 %v627, %v596
        %v661 = vmul.f32 %v631, %v597
        %v662 = vmul.f32 %v631, %v598
        %v663 = vmul.f32 %v631, %v599
        %v664 = vmul.f32 %v631, %v600
        %v665 = vmul.f32 %v635, %v601
        %v666 = vmul.f32 %v635, %v602
        %v667 = vmul.f32 %v635, %v603
        %v668 = vmul.f32 %v635, %v604
        %v669 = vmul.f32 %v639, %v605
        %v670 = vmul.f32 %v639, %v606
        %v671 = vmul.f32 %v639, %v607
        %v672 = vmul.f32 %v639, %v608
        %v673 = vmul.f32 %v643, %v609
        %v674 = vmul.f32 %v643, %v610
        %v675 = vmul.f32 %v643, %v611
        %v676 = vmul.f32 %v643, %v612
        %v677 = vmul.f32 %v647, %v613
        %v678 = vmul.f32 %v647, %v614
        %v679 = vmul.f32 %v647, %v615
        %v680 = vmul.f32 %v647, %v616
        %v681 = vadd.f32 %v649, %v653
        %v682 = vadd.f32 %v681, %v657
        %v683 = vadd.f32 %v682, %v661
        %v684 = vadd.f32 %v683, %v665
        %v685 = vadd.f32 %v684, %v669
        %v686 = vadd.f32 %v685, %v673
        %v687 = vadd.f32 %v686, %v677
        %v688 = vrot.slane %v687, 4
        %v689 = vadd.f32 %v687, %v688
        %v690 = vrot.slane %v689, 2
        %v691 = vadd.f32 %v689, %v690
        %v692 = vrot.slane %v691, 1
        %v693 = vadd.f32 %v691, %v692
        %v694 = vadd.f32 %v650, %v654
        %v695 = vadd.f32 %v694, %v658
        %v696 = vadd.f32 %v695, %v662
        %v697 = vadd.f32 %v696, %v666
        %v698 = vadd.f32 %v697, %v670
        %v699 = vadd.f32 %v698, %v674
        %v700 = vadd.f32 %v699, %v678
        %v701 = vrot.slane %v700, 4
        %v702 = vadd.f32 %v700, %v701
        %v703 = vrot.slane %v702, 2
        %v704 = vadd.f32 %v702, %v703
        %v705 = vrot.slane %v704, 1
        %v706 = vadd.f32 %v704, %v705
        %v707 = vadd.f32 %v651, %v655
        %v708 = vadd.f32 %v707, %v659
        %v709 = vadd.f32 %v708, %v663
        %v710 = vadd.f32 %v709, %v667
        %v711 = vadd.f32 %v710, %v671
        %v712 = vadd.f32 %v711, %v675
        %v713 = vadd.f32 %v712, %v679
        %v714 = vrot.slane %v713, 4
        %v715 = vadd.f32 %v713, %v714
        %v716 = vrot.slane %v715, 2
        %v717 = vadd.f32 %v715, %v716
        %v718 = vrot.slane %v717, 1
        %v719 = vadd.f32 %v717, %v718
        %v720 = vadd.f32 %v652, %v656
        %v721 = vadd.f32 %v720, %v660
        %v722 = vadd.f32 %v721, %v664
        %v723 = vadd.f32 %v722, %v668
        %v724 = vadd.f32 %v723, %v672
        %v725 = vadd.f32 %v724, %v676
        %v726 = vadd.f32 %v725, %v680
        %v727 = vrot.slane %v726, 4
        %v728 = vadd.f32 %v726, %v727
        %v729 = vrot.slane %v728, 2
        %v730 = vadd.f32 %v728, %v729
        %v731 = vrot.slane %v730, 1
        %v732 = vadd.f32 %v730, %v731
        %734 = vset.pattern.permute.xlu0 4
        %735 = vperm.xlu0 %734, %v178
        %v736 = vpop.permute.xlu0 %735
        %v738 = vadd.f32 %v693, %v736
        %v739 = vadd.f32 %v706, %v736
        %v740 = vadd.f32 %v719, %v736
        %v741 = vadd.f32 %v732, %v736
        %v746 = vrot.slane %v739, 7
        %v747 = vrot.slane %v740, 6
        %v748 = vrot.slane %v741, 5
        %vm749 = vcmask 1040384
        %v750 = vsel %vm749, %v738, %v746
        %vm751 = vcmask 1042434
        %v752 = vsel %vm751, %v747, %v748
        %vm753 = vcmask 1041408
        %v754 = vsel %vm753, %v750, %v752
        %v756 = vlaneseq
        %vm757 = vcmp.ge.s32.totalorder %v756, 0
        %vm758 = vcmp.lt.s32.totalorder %v756, 512
        %vm759 = vmand %vm757, %vm758
        %760 = vst.msk [vmem:[%s162] sm:$0xf] %vm759, %v754
        %s761 = sand.u32 %s93, 1
        %s762 = scalar_lea.sflag [#allocation3], %s761
        %s763 = sand.u32 %s93, 1
        %s764 = smul.addr %s763, 4
        %s765 = scalar_lea.vmem [#allocation2], %s764
        // Predicated region
        $region33: #{mlp_forward.1} parent=31 // pred_check
          %p766 = pneg %p103
        $region34: #{mlp_forward.1} parent=31 // pred_check_branch
          %768 = sbr.rel (%p766) target = $region36
        $region35: #{mlp_forward.1} parent=31 // pred_region
          %s769 = smul.u32 4, %s17
          %771 = vsyncadd %s762, 0
          %s772 = scalar_lea.hbm %s3, %s769
          %s774 = sshll.u32 %s765, 4
          %s775 = int_to_ptr.vmem [resolvable:$true] %s774
          %s776 = sshll.u32 %s772, 4
          %s777 = int_to_ptr.hbm [resolvable:$true] %s776
          %779 = dma.vmem_to_hbm [thread:$0]  %s775, 64, %s777, %s762
        $region36: #{mlp_forward.1} parent=31 // pred_fallthru
          _
      $region32: #{mlp_forward.1} parent=5 // pred_fallthru
        _
      %p780 = scmp.le.s32.totalorder 2, %s12
      // Predicated region
      $region37: #{mlp_forward.1} parent=5 // pred_check
        %p781 = pneg %p780
      $region38: #{mlp_forward.1} parent=5 // pred_check_branch
        %783 = sbr.rel (%p781) target = $region40
      $region39: #{mlp_forward.1} parent=5 // pred_region
        %s784 = ssub.s32 %s12, 2
        // Predicated region
        $region41: #{mlp_forward.1} parent=39 // pred_check
          %p785 = pneg %p109
        $region42: #{mlp_forward.1} parent=39 // pred_check_branch
          %787 = sbr.rel (%p785) target = $region44
        $region43: #{mlp_forward.1} parent=39 // pred_region
          %s788 = sand.u32 %s94, 1
          %s789 = scalar_lea.sflag [#allocation3], %s788
          %s790 = sand.u32 %s94, 1
          %s791 = smul.addr %s790, 4
          %s792 = scalar_lea.vmem [#allocation2], %s791
          %794 = dma.done %s789, 64
        $region44: #{mlp_forward.1} parent=39 // pred_fallthru
          _
      $region40: #{mlp_forward.1} parent=5 // pred_fallthru
        _
    $region6: #{mlp_forward.1} parent=1 // loop_footer
      %s16 = sadd.s32 1, %s12
    $region7: #{mlp_forward.1} parent=1 // loop_footer_branch
      %11 = sbr.rel target = $region3
    $region8: #{mlp_forward.1} parent=1 // loop_exit
      _
    %795 = vsyncpa [#allocation3], 1
    %s796 = scalar_lea.sflag [#allocation3], 1
    %797 = vsyncpa %s796, 1

</llo_original>
